<compile_context>
chip_gen: v6e
topology: v6e:2x2x1
jax: 0.10.0
libtpu: 0.0.40
codegen_flags: <defaults>
</compile_context>

<pallas_src>
import math

import jax
import jax.numpy as jnp
from jax.experimental import pallas as pl
from jax.experimental.pallas import tpu as pltpu


_SUB = 8  # one sublane group of rows gathered / stored at a time


def _make_kernel(scale: float, seq_tile: int):
    """scale / seq_tile are Python values -> baked in as literals."""

    def kernel(ids_ref, word_ref, pos_ref, out_ref):
        # ids_ref : SMEM (B, S) int32            (scalar prefetch)
        # word_ref: VMEM (V, D)  -- whole word-embedding table, resident
        # pos_ref : VMEM (L, D)  -- whole positional table, resident
        # out_ref : VMEM (seq_tile, D) output slab (batch dim squeezed)
        b = pl.program_id(0)
        j = pl.program_id(1)
        s0 = pl.multiple_of(j * seq_tile, seq_tile)  # aligned start position

        # Gather rows from the VMEM-resident word table, 8 (one sublane
        # group) at a time, fuse scale*w + pos, and issue dense (8, D)
        # unmasked stores into the output slab.
        for base in range(0, seq_tile, _SUB):
            nrows = min(_SUB, seq_tile - base)
            rows = [
                word_ref[pl.ds(ids_ref[b, s0 + base + r], 1), :]
                for r in range(nrows)
            ]
            w = jnp.concatenate(rows, axis=0).astype(jnp.float32)   # (nrows, D)
            p = pos_ref[pl.ds(s0 + base, nrows), :].astype(jnp.float32)
            out_ref[base:base + nrows, :] = scale * w + p

        # NOTE: padding_idx semantics come from the pre-zeroed table row;
        # nothing special is needed for pad tokens in the forward pass.
        # TODO(synk): training-mode dropout (pltpu.prng_seed + prng_random_bits
        # mask) -- forward here matches eval-mode (dropout == identity).

    return kernel


def positional_embedding_forward(x_ids, word_table, pos_table, d_model,
                                 *, seq_tile=128):
    """x_ids: (B, S) int token ids. Returns (B, S, D) float32 embeddings."""
    B, S = x_ids.shape
    V, D = word_table.shape
    L, D2 = pos_table.shape
    assert D == d_model and D2 == d_model
    # PyTorch would raise on an out-of-range position; Pallas has no runtime
    # bounds check, so enforce it at trace time.
    assert S <= L, "seq_len exceeds max_len of the positional table"

    ts = min(seq_tile, S)
    assert S % ts == 0, "seq_len must be divisible by the sequence tile"
    assert ts % _SUB == 0 or ts == S, "seq tile should be a multiple of 8"

    scale = float(math.sqrt(d_model))  # compile-time literal

    # VMEM budget: both tables resident (single-buffered, constant index map)
    # + double-buffered output slabs.
    itemsize = jnp.dtype(word_table.dtype).itemsize
    table_bytes = (V + L) * D * itemsize
    out_tile_bytes = 2 * ts * D * 4
    vmem_needed = table_bytes + out_tile_bytes
    if vmem_needed > (48 << 20):
        # TODO(synk): manual double-buffered DMA row-gather variant for vocab
        # tables too large to keep resident (needed for v7x's 64 MiB VMEM).
        raise NotImplementedError(
            "embedding tables too large for resident-VMEM variant")
    vmem_limit = int(min(max(2 * vmem_needed, 16 << 20), 64 << 20))

    grid_spec = pltpu.PrefetchScalarGridSpec(
        num_scalar_prefetch=1,                 # token ids -> SMEM
        grid=(B, S // ts),
        in_specs=[
            # whole word-embedding table resident in VMEM (fetched once)
            pl.BlockSpec((V, D), lambda b, j, ids: (0, 0)),
            # whole positional table resident in VMEM (fetched once)
            pl.BlockSpec((L, D), lambda b, j, ids: (0, 0)),
        ],
        # (None, ts, D): batch dim squeezed; last two dims are (8,128)-dense
        out_specs=pl.BlockSpec((None, ts, D), lambda b, j, ids: (b, j, 0)),
    )

    out = pl.pallas_call(
        _make_kernel(scale, ts),
        out_shape=jax.ShapeDtypeStruct((B, S, D), jnp.float32),
        grid_spec=grid_spec,
        compiler_params=pltpu.CompilerParams(
            dimension_semantics=("parallel", "parallel"),
            vmem_limit_bytes=vmem_limit,
        ),
    )(x_ids.astype(jnp.int32), word_table, pos_table)
    return out


if __name__ == "__main__":
    # Small deterministic setup consistent with the module's __init__.
    vocab_size = 64
    d_model = 128          # lane-dense (multiple of 128)
    max_len = 16
    pad_idx = 0
    batch, seq_len = 2, 8  # seq tile of 8 -> sublane-dense output slabs

    key = jax.random.PRNGKey(0)
    k_word, k_pos, k_ids = jax.random.split(key, 3)

    # nn.Embedding-style init (N(0,1)); padding_idx row zeroed like PyTorch.
    word_table = jax.random.normal(k_word, (vocab_size, d_model), jnp.float32)
    word_table = word_table.at[pad_idx].set(0.0)
    pos_table = jax.random.normal(k_pos, (max_len, d_model), jnp.float32)

    x_ids = jax.random.randint(k_ids, (batch, seq_len), 0, vocab_size, jnp.int32)

    out = positional_embedding_forward(
        x_ids, word_table, pos_table, d_model, seq_tile=8)
    out = jax.block_until_ready(out)

    # Correctness check against plain-JAX reference.
    ref = (math.sqrt(d_model) * word_table[x_ids]
           + pos_table[jnp.arange(seq_len)][None, :, :])
    assert out.shape == (batch, seq_len, d_model)
    assert jnp.allclose(out, ref, atol=1e-5, rtol=1e-5), "mismatch vs reference"

    print("KERNEL_OK")
</pallas_src>

<mosaic_0001>
module attributes {stable_mosaic.version = 11 : i64} {
  func.func @kernel(%arg0: i32, %arg1: i32, %arg2: memref<2x8xi32, #tpu.memory_space<smem>>, %arg3: memref<64x128xf32, #tpu.memory_space<vmem>>, %arg4: memref<16x128xf32, #tpu.memory_space<vmem>>, %arg5: memref<1x8x128xf32, #tpu.memory_space<vmem>>) attributes {dimension_semantics = [#tpu.dimension_semantics<parallel>, #tpu.dimension_semantics<parallel>], iteration_bounds = array<i64: 2, 1>, scalar_prefetch = 1 : i64, scratch_operands = 0 : i64, tpu.core_type = #tpu.core_type<tc>, window_params = [{pipeline_mode = #tpu.pipeline_mode<synchronous>, transform_indices = @transform_0, window_bounds = array<i64: 64, 128>}, {pipeline_mode = #tpu.pipeline_mode<synchronous>, transform_indices = @transform_1, window_bounds = array<i64: 16, 128>}, {transform_indices = @transform_2, window_bounds = array<i64: 1, 8, 128>}]} {
    %c8_i32 = arith.constant 8 : i32
    %0 = arith.muli %arg1, %c8_i32 : i32
    %1 = tpu.assume_multiple %0, 8 : i32
    %c0_i32 = arith.constant 0 : i32
    %2 = arith.addi %1, %c0_i32 : i32
    %c0_i32_0 = arith.constant 0 : i32
    %3 = arith.addi %2, %c0_i32_0 : i32
    %4 = arith.index_cast %arg0 : i32 to index
    %5 = arith.index_cast %3 : i32 to index
    %6 = memref.load %arg2[%4, %5] : memref<2x8xi32, #tpu.memory_space<smem>>
    %7 = arith.index_cast %6 : i32 to index
    %c0 = arith.constant 0 : index
    %8 = vector.load %arg3[%7, %c0] : memref<64x128xf32, #tpu.memory_space<vmem>>, vector<1x128xf32>
    %c0_i32_1 = arith.constant 0 : i32
    %9 = arith.addi %1, %c0_i32_1 : i32
    %c1_i32 = arith.constant 1 : i32
    %10 = arith.addi %9, %c1_i32 : i32
    %11 = arith.index_cast %arg0 : i32 to index
    %12 = arith.index_cast %10 : i32 to index
    %13 = memref.load %arg2[%11, %12] : memref<2x8xi32, #tpu.memory_space<smem>>
    %14 = arith.index_cast %13 : i32 to index
    %c0_2 = arith.constant 0 : index
    %15 = vector.load %arg3[%14, %c0_2] : memref<64x128xf32, #tpu.memory_space<vmem>>, vector<1x128xf32>
    %c0_i32_3 = arith.constant 0 : i32
    %16 = arith.addi %1, %c0_i32_3 : i32
    %c2_i32 = arith.constant 2 : i32
    %17 = arith.addi %16, %c2_i32 : i32
    %18 = arith.index_cast %arg0 : i32 to index
    %19 = arith.index_cast %17 : i32 to index
    %20 = memref.load %arg2[%18, %19] : memref<2x8xi32, #tpu.memory_space<smem>>
    %21 = arith.index_cast %20 : i32 to index
    %c0_4 = arith.constant 0 : index
    %22 = vector.load %arg3[%21, %c0_4] : memref<64x128xf32, #tpu.memory_space<vmem>>, vector<1x128xf32>
    %c0_i32_5 = arith.constant 0 : i32
    %23 = arith.addi %1, %c0_i32_5 : i32
    %c3_i32 = arith.constant 3 : i32
    %24 = arith.addi %23, %c3_i32 : i32
    %25 = arith.index_cast %arg0 : i32 to index
    %26 = arith.index_cast %24 : i32 to index
    %27 = memref.load %arg2[%25, %26] : memref<2x8xi32, #tpu.memory_space<smem>>
    %28 = arith.index_cast %27 : i32 to index
    %c0_6 = arith.constant 0 : index
    %29 = vector.load %arg3[%28, %c0_6] : memref<64x128xf32, #tpu.memory_space<vmem>>, vector<1x128xf32>
    %c0_i32_7 = arith.constant 0 : i32
    %30 = arith.addi %1, %c0_i32_7 : i32
    %c4_i32 = arith.constant 4 : i32
    %31 = arith.addi %30, %c4_i32 : i32
    %32 = arith.index_cast %arg0 : i32 to index
    %33 = arith.index_cast %31 : i32 to index
    %34 = memref.load %arg2[%32, %33] : memref<2x8xi32, #tpu.memory_space<smem>>
    %35 = arith.index_cast %34 : i32 to index
    %c0_8 = arith.constant 0 : index
    %36 = vector.load %arg3[%35, %c0_8] : memref<64x128xf32, #tpu.memory_space<vmem>>, vector<1x128xf32>
    %c0_i32_9 = arith.constant 0 : i32
    %37 = arith.addi %1, %c0_i32_9 : i32
    %c5_i32 = arith.constant 5 : i32
    %38 = arith.addi %37, %c5_i32 : i32
    %39 = arith.index_cast %arg0 : i32 to index
    %40 = arith.index_cast %38 : i32 to index
    %41 = memref.load %arg2[%39, %40] : memref<2x8xi32, #tpu.memory_space<smem>>
    %42 = arith.index_cast %41 : i32 to index
    %c0_10 = arith.constant 0 : index
    %43 = vector.load %arg3[%42, %c0_10] : memref<64x128xf32, #tpu.memory_space<vmem>>, vector<1x128xf32>
    %c0_i32_11 = arith.constant 0 : i32
    %44 = arith.addi %1, %c0_i32_11 : i32
    %c6_i32 = arith.constant 6 : i32
    %45 = arith.addi %44, %c6_i32 : i32
    %46 = arith.index_cast %arg0 : i32 to index
    %47 = arith.index_cast %45 : i32 to index
    %48 = memref.load %arg2[%46, %47] : memref<2x8xi32, #tpu.memory_space<smem>>
    %49 = arith.index_cast %48 : i32 to index
    %c0_12 = arith.constant 0 : index
    %50 = vector.load %arg3[%49, %c0_12] : memref<64x128xf32, #tpu.memory_space<vmem>>, vector<1x128xf32>
    %c0_i32_13 = arith.constant 0 : i32
    %51 = arith.addi %1, %c0_i32_13 : i32
    %c7_i32 = arith.constant 7 : i32
    %52 = arith.addi %51, %c7_i32 : i32
    %53 = arith.index_cast %arg0 : i32 to index
    %54 = arith.index_cast %52 : i32 to index
    %55 = memref.load %arg2[%53, %54] : memref<2x8xi32, #tpu.memory_space<smem>>
    %56 = arith.index_cast %55 : i32 to index
    %c0_14 = arith.constant 0 : index
    %57 = vector.load %arg3[%56, %c0_14] : memref<64x128xf32, #tpu.memory_space<vmem>>, vector<1x128xf32>
    %58 = tpu.concatenate %8, %15, %22, %29, %36, %43, %50, %57 in 0 : vector<1x128xf32>, vector<1x128xf32>, vector<1x128xf32>, vector<1x128xf32>, vector<1x128xf32>, vector<1x128xf32>, vector<1x128xf32>, vector<1x128xf32> -> vector<8x128xf32>
    %c0_i32_15 = arith.constant 0 : i32
    %59 = arith.addi %1, %c0_i32_15 : i32
    %60 = arith.index_cast %59 : i32 to index
    %c0_16 = arith.constant 0 : index
    %61 = vector.load %arg4[%60, %c0_16] : memref<16x128xf32, #tpu.memory_space<vmem>>, vector<8x128xf32>
    %cst = arith.constant 11.3137083 : f32
    %62 = vector.broadcast %cst : f32 to vector<8x128xf32>
    %63 = arith.mulf %62, %58 : vector<8x128xf32>
    %64 = arith.addf %63, %61 : vector<8x128xf32>
    %c0_17 = arith.constant 0 : index
    %c0_18 = arith.constant 0 : index
    %c0_19 = arith.constant 0 : index
    %65 = vector.load %arg5[%c0_17, %c0_18, %c0_19] : memref<1x8x128xf32, #tpu.memory_space<vmem>>, vector<1x8x128xf32>
    %66 = vector.shape_cast %65 : vector<1x8x128xf32> to vector<8x128xf32>
    %67 = vector.shape_cast %64 : vector<8x128xf32> to vector<1x8x128xf32>
    tpu.vector_store %arg5[%c0_17, %c0_18, %c0_19], %67 {strides = array<i32>} : memref<1x8x128xf32, #tpu.memory_space<vmem>>, vector<1x8x128xf32>,
    return
  }
  func.func @transform_0(%arg0: i32, %arg1: i32, %arg2: memref<2x8xi32, #tpu.memory_space<smem>>) -> (i32, i32) {
    %c0_i32 = arith.constant 0 : i32
    %c0_i32_0 = arith.constant 0 : i32
    %c0_i32_1 = arith.constant 0 : i32
    return %c0_i32, %c0_i32_0 : i32, i32
  }
  func.func @transform_1(%arg0: i32, %arg1: i32, %arg2: memref<2x8xi32, #tpu.memory_space<smem>>) -> (i32, i32) {
    %c0_i32 = arith.constant 0 : i32
    %c0_i32_0 = arith.constant 0 : i32
    %c0_i32_1 = arith.constant 0 : i32
    return %c0_i32, %c0_i32_0 : i32, i32
  }
  func.func @transform_2(%arg0: i32, %arg1: i32, %arg2: memref<2x8xi32, #tpu.memory_space<smem>>) -> (i32, i32, i32) {
    %c0_i32 = arith.constant 0 : i32
    %c0_i32_0 = arith.constant 0 : i32
    return %arg0, %arg1, %c0_i32 : i32, i32, i32
  }
}

</mosaic_0001>

<llo_original>
// kernel: tpu_custom_call.1
$region0: #{tpu_custom_call.1}
  #allocation0 [shape = 'u32[]', space=smem, size = 0x4, offset = 0x4, fixed_abs, tag = 'smem constant byte address 0x4 - core index']
  #allocation1 [shape = 'u32[144,128]{1,0:T(1,128)}', space=vmem, size = 0x12000, scoped, tag = 'internal scratch']
  #allocation2 [shape = 's32[1]{0}', space=sflag, size = 0x4, scoped, tag = 'scoped memory for tpu_custom_call.1']
  #allocation3 [shape = 'u8[1024]{0}', space=smem, size = 0x400, scoped, tag = 'prefetched SMEM operand 0']
  %s0 = inlined_call_operand.hbm [shape: s32[2,8], index: 0, kind: input, shape index: {}]
  %s1 = inlined_call_operand.hbm [shape: f32[64,128], index: 1, kind: input, shape index: {}]
  %s2 = inlined_call_operand.hbm [shape: f32[16,128], index: 2, kind: input, shape index: {}]
  %s3 = inlined_call_operand.hbm [shape: f32[2,8,128], index: 3, kind: output, shape index: {}]
  %s4 = sld [smem:[#allocation0]]
  $region49: #{tpu_custom_call.1} parent=0
    _
  %s6 = ssub.s32 1, %s4
  %s7 = scalar_select 0, %s6, %s4
  %9 = dma.hbm_to_smem %s0, 32, [#allocation3], [#allocation2]
  %10 = dma.done [#allocation2], 32
  %11 = sfence
  $region1: #{tpu_custom_call.1} parent=0
    #allocation4 [shape = 'u8[32768]{0}', space=vmem, size = 0x8000, scoped, tag = 'input window, operand 1, single buffered']
    #allocation5 [shape = 's32[2]{0}', space=sflag, size = 0x8, scoped, tag = 'scoped memory for tpu_custom_call.1']
    #allocation6 [shape = 's32[2]{0}', space=sflag, size = 0x8, scoped, tag = 'scoped memory for tpu_custom_call.1']
    #allocation7 [shape = 'u8[8192]{0}', space=vmem, size = 0x2000, scoped, tag = 'input window, operand 2, single buffered']
    #allocation8 [shape = 's32[1]{0}', space=sflag, size = 0x4, scoped, tag = 'scoped memory for tpu_custom_call.1']
    #allocation9 [shape = 'u8[8192]{0}', space=vmem, size = 0x2000, scoped, tag = 'output window, operand 0']
    %12 = vsyncpa [#allocation5], 0
    %13 = vsyncpa [#allocation8], 0
    %14 = vsyncpa [#allocation6], 0
    %s15 = scalar_lea.sflag [#allocation6], 1
    %16 = vsyncpa %s15, 0
    loop: start=0, step=1, limit=4
    $region2: #{tpu_custom_call.1} parent=1 // loop_pre_header
      _
    $region3: #{tpu_custom_call.1} parent=1 // loop_header
      %s18 = sphi 0, %s22
      %p19 = scmp.ge.s32.totalorder %s18, 4
      %s25 = sphi 0, %s37
      %s26 = sphi 0, %s33
      %s27 = sphi 0, %s25
      %s28 = sphi 0, %s26
      %s29 = sphi 0, %s27
      %s30 = sphi 0, %s28
      %s38 = sphi 0, %s38
      %s40 = sphi 0, %s38
      %s41 = sphi 0, %s40
      %s55 = sphi 0, %s41
      %s59 = sphi 0, %s59
      %s61 = sphi 0, %s59
      %s62 = sphi 0, %s61
      %s76 = sphi 0, %s62
      %s84 = sphi 0, %s86
      %s87 = sphi 0, %s84
      %s88 = sphi 0, %s87
      %s104 = sphi 0, %s88
    $region4: #{tpu_custom_call.1} parent=1 // loop_header_branch
      %21 = sbr.rel (%p19) target = $region8
    $region5: #{tpu_custom_call.1} parent=1 // loop_body
      %s23 = ssub.s32 %s18, 1
      %s24 = ssub.s32 %s18, 2
      %s31 = sadd.s32 1, %s26
      %p32 = scmp.ge.s32.totalorder %s31, 1
      %s33 = scalar_select %p32, 0, %s31
      %s34 = sadd.s32 1, %s25
      %s35 = scalar_select %p32, %s34, %s25
      %p36 = scmp.ge.s32.totalorder %s35, 2
      %s37 = scalar_select %p36, 0, %s35
      %s39 = sadd.s32 %s38, 1
      %p42 = scmp.eq.s32.totalorder %s18, 1
      %p43 = scmp.ne.s32.totalorder %s38, %s40
      %p44 = scmp.eq.s32.totalorder %s18, 0
      %p45 = por %p43, %p44
      %p46 = scmp.ne.s32.totalorder %s38, %s40
      %p47 = scmp.eq.s32.totalorder %s23, 1
      %p48 = por %p46, %p47
      %p49 = scmp.ne.s32.totalorder %s40, %s41
      %p50 = scmp.eq.s32.totalorder %s23, 0
      %p51 = por %p49, %p50
      %p52 = scmp.ne.s32.totalorder %s40, %s41
      %p53 = scmp.eq.s32.totalorder %s24, 1
      %p54 = por %p52, %p53
      %p56 = scmp.ne.s32.totalorder %s41, %s55
      %p57 = scmp.eq.s32.totalorder %s24, 0
      %p58 = por %p56, %p57
      %s60 = sadd.s32 %s59, 1
      %p63 = scmp.eq.s32.totalorder %s18, 1
      %p64 = scmp.ne.s32.totalorder %s59, %s61
      %p65 = scmp.eq.s32.totalorder %s18, 0
      %p66 = por %p64, %p65
      %p67 = scmp.ne.s32.totalorder %s59, %s61
      %p68 = scmp.eq.s32.totalorder %s23, 1
      %p69 = por %p67, %p68
      %p70 = scmp.ne.s32.totalorder %s61, %s62
      %p71 = scmp.eq.s32.totalorder %s23, 0
      %p72 = por %p70, %p71
      %p73 = scmp.ne.s32.totalorder %s61, %s62
      %p74 = scmp.eq.s32.totalorder %s24, 1
      %p75 = por %p73, %p74
      %p77 = scmp.ne.s32.totalorder %s62, %s76
      %p78 = scmp.eq.s32.totalorder %s24, 0
      %p79 = por %p77, %p78
      %s80 = ssub.s32 %s25, %s37
      %s81 = ssub.s32 %s26, %s33
      %s82 = sor.u32 %s80, %s81
      %p83 = scmp.eq.s32.totalorder %s82, 0
      %s85 = sadd.s32 %s84, 1
      %s86 = scalar_select %p83, %s84, %s85
      %p89 = pneg %p83
      %p90 = scmp.eq.s32.totalorder %s18, 1
      %p91 = por %p89, %p90
      %p92 = scmp.ne.s32.totalorder %s84, %s87
      %p93 = scmp.eq.s32.totalorder %s18, 0
      %p94 = por %p92, %p93
      %p95 = scmp.ne.s32.totalorder %s84, %s87
      %p96 = scmp.eq.s32.totalorder %s23, 1
      %p97 = por %p95, %p96
      %p98 = scmp.ne.s32.totalorder %s87, %s88
      %p99 = scmp.eq.s32.totalorder %s23, 0
      %p100 = por %p98, %p99
      %p101 = scmp.ne.s32.totalorder %s87, %s88
      %p102 = scmp.eq.s32.totalorder %s24, 1
      %p103 = por %p101, %p102
      %p105 = scmp.ne.s32.totalorder %s88, %s104
      %p106 = scmp.eq.s32.totalorder %s24, 0
      %p107 = por %p105, %p106
      %p108 = scmp.le.s32.totalorder 1, %s18
      %p109 = scmp.lt.s32.totalorder %s18, 3
      %p110 = pnand %p108, %p109
      %p111 = pneg %p110
      // Predicated region
      $region9: #{tpu_custom_call.1} parent=5 // pred_check
        _
      $region10: #{tpu_custom_call.1} parent=5 // pred_check_branch
        %113 = sbr.rel (%p110) target = $region12
      $region11: #{tpu_custom_call.1} parent=5 // pred_region
        %s114 = ssub.s32 %s18, 1
        // Predicated region
        $region13: #{tpu_custom_call.1} parent=11 // pred_check
          %p115 = pneg %p51
        $region14: #{tpu_custom_call.1} parent=11 // pred_check_branch
          %117 = sbr.rel (%p115) target = $region16
        $region15: #{tpu_custom_call.1} parent=11 // pred_region
          %s119 = ssub.s32 1024, 1024
          %120 = vsyncadd [#allocation5], %s119
          %s121 = sshll.u32 [#allocation4], 4
          %s122 = int_to_ptr.vmem [resolvable:$true] %s121
          %127 = dma.hbm_to_vmem [thread:$0]  %s1, 1024, %s122, [#allocation5], 128, 128, 8
        $region16: #{tpu_custom_call.1} parent=11 // pred_fallthru
          _
        // Predicated region
        $region17: #{tpu_custom_call.1} parent=11 // pred_check
          %p128 = pneg %p72
        $region18: #{tpu_custom_call.1} parent=11 // pred_check_branch
          %130 = sbr.rel (%p128) target = $region20
        $region19: #{tpu_custom_call.1} parent=11 // pred_region
          %s132 = ssub.s32 256, 256
          %133 = vsyncadd [#allocation8], %s132
          %s134 = sshll.u32 [#allocation7], 4
          %s135 = int_to_ptr.vmem [resolvable:$true] %s134
          %140 = dma.hbm_to_vmem [thread:$0]  %s2, 256, %s135, [#allocation8], 128, 128, 8
        $region20: #{tpu_custom_call.1} parent=11 // pred_fallthru
          _
      $region12: #{tpu_custom_call.1} parent=5 // pred_fallthru
        _
      %p141 = scmp.lt.s32.totalorder %s18, 2
      // Predicated region
      $region21: #{tpu_custom_call.1} parent=5 // pred_check
        %p142 = pneg %p141
      $region22: #{tpu_custom_call.1} parent=5 // pred_check_branch
        %144 = sbr.rel (%p142) target = $region24
      $region23: #{tpu_custom_call.1} parent=5 // pred_region
        _
      $region24: #{tpu_custom_call.1} parent=5 // pred_fallthru
        _
      %p145 = scmp.le.s32.totalorder 1, %s18
      %p146 = scmp.lt.s32.totalorder %s18, 3
      %p147 = pnand %p145, %p146
      %p148 = pneg %p147
      // Predicated region
      $region25: #{tpu_custom_call.1} parent=5 // pred_check
        _
      $region26: #{tpu_custom_call.1} parent=5 // pred_check_branch
        %150 = sbr.rel (%p147) target = $region28
      $region27: #{tpu_custom_call.1} parent=5 // pred_region
        %s151 = ssub.s32 %s18, 1
        // Predicated region
        $region29: #{tpu_custom_call.1} parent=27 // pred_check
          %p152 = pneg %p51
        $region30: #{tpu_custom_call.1} parent=27 // pred_check_branch
          %154 = sbr.rel (%p152) target = $region32
        $region31: #{tpu_custom_call.1} parent=27 // pred_region
          %155 = dma.done [#allocation5], 1024
        $region32: #{tpu_custom_call.1} parent=27 // pred_fallthru
          _
        // Predicated region
        $region33: #{tpu_custom_call.1} parent=27 // pred_check
          %p156 = pneg %p72
        $region34: #{tpu_custom_call.1} parent=27 // pred_check_branch
          %158 = sbr.rel (%p156) target = $region36
        $region35: #{tpu_custom_call.1} parent=27 // pred_region
          %159 = dma.done [#allocation8], 256
        $region36: #{tpu_custom_call.1} parent=27 // pred_fallthru
          _
        %p160 = pneg %p51
        %p161 = pneg %p48
        %p162 = pneg %p72
        %p163 = pneg %p69
        %p164 = pneg %p100
        %p165 = pneg %p97
        %s166 = sand.u32 %s87, 1
        %s167 = scalar_lea.sflag [#allocation6], %s166
        %s168 = sand.u32 %s87, 1
        %s169 = smul.addr %s168, 8
        %s170 = scalar_lea.vmem [#allocation9], %s169
        %s171 = smul.u32 %s28, 8
        %s172 = sshra.s32 %s171, 7
        %s173 = sand.u32 %s171, 127
        %s174 = sadd.s32 %s172, %s27
        %s175 = smul.u32 %s174, 128
        %s176 = sshra.s32 %s171, 7
        %s177 = sand.u32 %s171, 127
        %s178 = sadd.s32 %s175, %s177
        %s179 = sld [smem:[#allocation3 + %s178]]
        %s180 = scalar_lea.vmem [#allocation4], %s179
        %v181 = vld [vmem:[%s180] sm:$0x1]
        %s182 = sadd.s32 %s171, 1
        %s183 = sshra.s32 %s182, 7
        %s184 = sand.u32 %s182, 127
        %s185 = sadd.s32 %s183, %s27
        %s186 = smul.u32 %s185, 128
        %s187 = sshra.s32 %s182, 7
        %s188 = sand.u32 %s182, 127
        %s189 = sadd.s32 %s186, %s188
        %s190 = sld [smem:[#allocation3 + %s189]]
        %s191 = scalar_lea.vmem [#allocation4], %s190
        %v192 = vld [vmem:[%s191] sm:$0x1]
        %s193 = sadd.s32 %s171, 2
        %s194 = sshra.s32 %s193, 7
        %s195 = sand.u32 %s193, 127
        %s196 = sadd.s32 %s194, %s27
        %s197 = smul.u32 %s196, 128
        %s198 = sshra.s32 %s193, 7
        %s199 = sand.u32 %s193, 127
        %s200 = sadd.s32 %s197, %s199
        %s201 = sld [smem:[#allocation3 + %s200]]
        %s202 = scalar_lea.vmem [#allocation4], %s201
        %v203 = vld [vmem:[%s202] sm:$0x1]
        %s204 = sadd.s32 %s171, 3
        %s205 = sshra.s32 %s204, 7
        %s206 = sand.u32 %s204, 127
        %s207 = sadd.s32 %s205, %s27
        %s208 = smul.u32 %s207, 128
        %s209 = sshra.s32 %s204, 7
        %s210 = sand.u32 %s204, 127
        %s211 = sadd.s32 %s208, %s210
        %s212 = sld [smem:[#allocation3 + %s211]]
        %s213 = scalar_lea.vmem [#allocation4], %s212
        %v214 = vld [vmem:[%s213] sm:$0x1]
        %s215 = sadd.s32 %s171, 4
        %s216 = sshra.s32 %s215, 7
        %s217 = sand.u32 %s215, 127
        %s218 = sadd.s32 %s216, %s27
        %s219 = smul.u32 %s218, 128
        %s220 = sshra.s32 %s215, 7
        %s221 = sand.u32 %s215, 127
        %s222 = sadd.s32 %s219, %s221
        %s223 = sld [smem:[#allocation3 + %s222]]
        %s224 = scalar_lea.vmem [#allocation4], %s223
        %v225 = vld [vmem:[%s224] sm:$0x1]
        %s226 = sadd.s32 %s171, 5
        %s227 = sshra.s32 %s226, 7
        %s228 = sand.u32 %s226, 127
        %s229 = sadd.s32 %s227, %s27
        %s230 = smul.u32 %s229, 128
        %s231 = sshra.s32 %s226, 7
        %s232 = sand.u32 %s226, 127
        %s233 = sadd.s32 %s230, %s232
        %s234 = sld [smem:[#allocation3 + %s233]]
        %s235 = scalar_lea.vmem [#allocation4], %s234
        %v236 = vld [vmem:[%s235] sm:$0x1]
        %s237 = sadd.s32 %s171, 6
        %s238 = sshra.s32 %s237, 7
        %s239 = sand.u32 %s237, 127
        %s240 = sadd.s32 %s238, %s27
        %s241 = smul.u32 %s240, 128
        %s242 = sshra.s32 %s237, 7
        %s243 = sand.u32 %s237, 127
        %s244 = sadd.s32 %s241, %s243
        %s245 = sld [smem:[#allocation3 + %s244]]
        %s246 = scalar_lea.vmem [#allocation4], %s245
        %v247 = vld [vmem:[%s246] sm:$0x1]
        %s248 = sadd.s32 %s171, 7
        %s249 = sshra.s32 %s248, 7
        %s250 = sand.u32 %s248, 127
        %s251 = sadd.s32 %s249, %s27
        %s252 = smul.u32 %s251, 128
        %s253 = sshra.s32 %s248, 7
        %s254 = sand.u32 %s248, 127
        %s255 = sadd.s32 %s252, %s254
        %s256 = sld [smem:[#allocation3 + %s255]]
        %s257 = scalar_lea.vmem [#allocation4], %s256
        %v258 = vld [vmem:[%s257] sm:$0x1]
        %v260 = vrot.slane %v192, 7
        %v263 = vrot.slane %v203, 6
        %v266 = vrot.slane %v214, 5
        %v269 = vrot.slane %v225, 4
        %v272 = vrot.slane %v236, 3
        %v275 = vrot.slane %v247, 2
        %v278 = vrot.slane %v258, 1
        %vm280 = vcmask 1040384
        %v281 = vsel %vm280, %v181, %v260
        %vm282 = vcmask 1041408
        %v283 = vsel %vm282, %v281, %v263
        %vm284 = vcmask 1042432
        %v285 = vsel %vm284, %v283, %v266
        %vm286 = vcmask 1043456
        %v287 = vsel %vm286, %v285, %v269
        %vm288 = vcmask 1044480
        %v289 = vsel %vm288, %v287, %v272
        %vm290 = vcmask 1045504
        %v291 = vsel %vm290, %v289, %v275
        %vm292 = vcmask 1046528
        %v293 = vsel %vm292, %v291, %v278
        %s294 = scalar_lea.vmem [#allocation7], %s171
        %v295 = vld [vmem:[%s294] sm:$0xff]
        %v296 = vmul.f32 %v293, 11.313708
        %v297 = vadd.f32 %v296, %v295
        %298 = vst [vmem:[%s170] sm:$0xff] %v297
        %s299 = sand.u32 %s87, 1
        %s300 = scalar_lea.sflag [#allocation6], %s299
        %s301 = sand.u32 %s87, 1
        %s302 = smul.addr %s301, 8
        %s303 = scalar_lea.vmem [#allocation9], %s302
        // Predicated region
        $region37: #{tpu_custom_call.1} parent=27 // pred_check
          %p304 = pneg %p97
        $region38: #{tpu_custom_call.1} parent=27 // pred_check_branch
          %306 = sbr.rel (%p304) target = $region40
        $region39: #{tpu_custom_call.1} parent=27 // pred_region
          %s308 = ssub.s32 128, 128
          %309 = vsyncadd %s300, %s308
          %s310 = sadd.s32 %s28, %s27
          %s311 = smul.addr %s310, 128
          %s312 = scalar_lea.hbm %s3, %s311
          %s314 = sshll.u32 %s303, 4
          %s315 = int_to_ptr.vmem [resolvable:$true] %s314
          %317 = dma.vmem_to_hbm [thread:$0]  %s315, 128, %s312, %s300
        $region40: #{tpu_custom_call.1} parent=27 // pred_fallthru
          _
      $region28: #{tpu_custom_call.1} parent=5 // pred_fallthru
        _
      %p318 = scmp.le.s32.totalorder 2, %s18
      // Predicated region
      $region41: #{tpu_custom_call.1} parent=5 // pred_check
        %p319 = pneg %p318
      $region42: #{tpu_custom_call.1} parent=5 // pred_check_branch
        %321 = sbr.rel (%p319) target = $region44
      $region43: #{tpu_custom_call.1} parent=5 // pred_region
        %s322 = ssub.s32 %s18, 2
        // Predicated region
        $region45: #{tpu_custom_call.1} parent=43 // pred_check
          %p323 = pneg %p103
        $region46: #{tpu_custom_call.1} parent=43 // pred_check_branch
          %325 = sbr.rel (%p323) target = $region48
        $region47: #{tpu_custom_call.1} parent=43 // pred_region
          %s326 = sand.u32 %s88, 1
          %s327 = scalar_lea.sflag [#allocation6], %s326
          %s328 = sand.u32 %s88, 1
          %s329 = smul.addr %s328, 8
          %s330 = scalar_lea.vmem [#allocation9], %s329
          %331 = dma.done %s327, 128
        $region48: #{tpu_custom_call.1} parent=43 // pred_fallthru
          _
      $region44: #{tpu_custom_call.1} parent=5 // pred_fallthru
        _
    $region6: #{tpu_custom_call.1} parent=1 // loop_footer
      %s22 = sadd.s32 1, %s18
    $region7: #{tpu_custom_call.1} parent=1 // loop_footer_branch
      %17 = sbr.rel target = $region3
    $region8: #{tpu_custom_call.1} parent=1 // loop_exit
      _
    %332 = vsyncpa [#allocation5], 1
    %s333 = scalar_lea.sflag [#allocation5], 1
    %334 = vsyncpa %s333, 1
    %335 = vsyncpa [#allocation8], 1
    %336 = vsyncpa [#allocation6], 1
    %s337 = scalar_lea.sflag [#allocation6], 1
    %338 = vsyncpa %s337, 1

</llo_original>
